<compile_context>
chip_gen: v5e
topology: v5e:2x2
jax: 0.10.0
libtpu: 0.0.40
codegen_flags: <defaults>
</compile_context>

<pallas_src>
import functools

import jax
import jax.numpy as jnp
from jax import lax
from jax.experimental import pallas as pl
from jax.experimental.pallas import tpu as pltpu


# ----------------------------------------------------------------------------
# Small helpers
# ----------------------------------------------------------------------------
def _round_up(x, m):
    return ((x + m - 1) // m) * m


def _fit_tile(tile, dim, align):
    """Largest tile <= `tile` that divides `dim` and is `align`-aligned, else the full dim."""
    if dim <= tile:
        return dim
    tile = max((tile // align) * align, align)
    while tile > 0 and dim % tile:
        tile -= align
    return tile if tile > 0 else dim


def _block_bytes(shape, dtype):
    """VMEM footprint of one block, padding the last two dims to the (sublane, lane) tile."""
    itemsize = jnp.dtype(dtype).itemsize
    sublane = {4: 8, 2: 16, 1: 32}.get(itemsize, 8)
    dims = list(shape)
    dims[-1] = _round_up(dims[-1], 128)
    if len(dims) >= 2:
        dims[-2] = _round_up(dims[-2], sublane)
    n = itemsize
    for d in dims:
        n *= d
    return n


def _vmem_limit(blocks, *, floor=32 << 20, ceil=64 << 20):
    """Scoped-VMEM budget: double-buffered blocks + headroom, clamped to [floor, ceil]."""
    need = 2 * sum(_block_bytes(s, d) for s, d in blocks)      # x2 double buffering
    return int(min(max(2 * need + (1 << 20), floor), ceil))


# ----------------------------------------------------------------------------
# Kernel 1: dense layer  y = x @ W_t + b  with the full weight resident in VMEM
# ----------------------------------------------------------------------------
def linear_kernel(x_ref, w_ref, b_ref, o_ref):
    o_ref[...] = (
        jnp.dot(x_ref[...], w_ref[...], preferred_element_type=jnp.float32) + b_ref[...]
    ).astype(o_ref.dtype)


def linear(x2d, w_t, bias2d, *, out_dtype=jnp.float32, tm=512):
    """x2d: (M, K) bf16; w_t: (K, N) bf16 pre-transposed; bias2d: (1, N) f32."""
    m, kdim = x2d.shape
    k2, n = w_t.shape
    assert kdim == k2
    tm = _fit_tile(tm, m, 16)     # bf16 sublane alignment
    grid = (m // tm,)
    vmem = _vmem_limit([
        ((tm, kdim), x2d.dtype), ((kdim, n), w_t.dtype),
        ((1, n), jnp.float32), ((tm, n), out_dtype),
    ])
    # TODO(synk): fall back to K/N tiling with an f32 accumulator for very large
    # embed dims where the full bf16 weight no longer fits VMEM.
    return pl.pallas_call(
        linear_kernel,
        out_shape=jax.ShapeDtypeStruct((m, n), out_dtype),
        grid=grid,
        in_specs=[
            pl.BlockSpec((tm, kdim), lambda i: (i, 0)),
            pl.BlockSpec((kdim, n), lambda i: (0, 0)),   # weight resident across M tiles
            pl.BlockSpec((1, n), lambda i: (0, 0)),      # bias resident
        ],
        out_specs=pl.BlockSpec((tm, n), lambda i: (i, 0)),
        compiler_params=pltpu.CompilerParams(
            dimension_semantics=("parallel",),
            vmem_limit_bytes=vmem,
        ),
    )(x2d, w_t, bias2d)


# ----------------------------------------------------------------------------
# Kernel 2: scaled dot-product attention, one (batch, head, q-tile) per step.
# ----------------------------------------------------------------------------
def attn_kernel(q_ref, k_ref, v_ref, m_ref, o_ref, p_ref):
    q = q_ref[0, 0]                                     # (tq, D) bf16, pre-scaled
    k = k_ref[0, 0]                                     # (S,  D) bf16
    v = v_ref[0, 0]                                     # (S,  D) bf16
    masked = m_ref[0] != 0                              # (tq, S) bool, direct int8 compare

    # q . k^T without materializing a transpose: contract D of both operands.
    scores = lax.dot_general(
        q, k, (((1,), (1,)), ((), ())), preferred_element_type=jnp.float32
    )                                                   # (tq, S) f32
    scores = jnp.where(masked, jnp.float32(-1e30), scores)
    mx = jnp.max(scores, axis=-1, keepdims=True)
    e = jnp.exp(scores - mx)
    denom = jnp.sum(e, axis=-1, keepdims=True)
    prob = e * pl.reciprocal(denom)                     # exact: emitted rows sum to 1
    p_ref[0, 0] = prob.astype(p_ref.dtype)
    ctx = jnp.dot(prob.astype(v.dtype), v, preferred_element_type=jnp.float32)
    o_ref[0, 0] = ctx.astype(o_ref.dtype)


def scaled_dot_product_attention(q, k, v, mask_i8, *, tq=256):
    """q/k/v: (B, H, S, D) bf16; mask_i8: (B, S, S) int8 (nonzero == masked)."""
    b, h, s, d = q.shape
    tq = _fit_tile(tq, s, 32)   # 32: int8 mask sublane multiple (covers bf16/f32 too)
    grid = (b, h, s // tq)
    vmem = _vmem_limit([
        ((1, 1, tq, d), q.dtype), ((1, 1, s, d), k.dtype), ((1, 1, s, d), v.dtype),
        ((1, tq, s), jnp.int8),
        ((1, 1, tq, d), q.dtype), ((1, 1, tq, s), jnp.float32),
    ])
    # TODO(synk): emit attn_prob as bf16 if the caller's contract allows it — the
    # (B,H,S,S) f32 writeback dominates HBM traffic at large S.
    ctx, prob = pl.pallas_call(
        attn_kernel,
        out_shape=(
            jax.ShapeDtypeStruct((b, h, s, d), q.dtype),        # per-head context
            jax.ShapeDtypeStruct((b, h, s, s), jnp.float32),    # attn_prob (module output)
        ),
        grid=grid,
        in_specs=[
            pl.BlockSpec((1, 1, tq, d), lambda bi, hi, qi: (bi, hi, qi, 0)),
            pl.BlockSpec((1, 1, s, d), lambda bi, hi, qi: (bi, hi, 0, 0)),   # K resident per (b,h)
            pl.BlockSpec((1, 1, s, d), lambda bi, hi, qi: (bi, hi, 0, 0)),   # V resident per (b,h)
            pl.BlockSpec((1, tq, s), lambda bi, hi, qi: (bi, qi, 0)),        # mask shared over heads
        ],
        out_specs=(
            pl.BlockSpec((1, 1, tq, d), lambda bi, hi, qi: (bi, hi, qi, 0)),
            pl.BlockSpec((1, 1, tq, s), lambda bi, hi, qi: (bi, hi, qi, 0)),
        ),
        compiler_params=pltpu.CompilerParams(
            dimension_semantics=("parallel", "parallel", "parallel"),
            vmem_limit_bytes=vmem,
        ),
    )(q, k, v, mask_i8)
    return ctx, prob


# ----------------------------------------------------------------------------
# Parameter prep (outside jit): pre-transpose + pre-cast weights, fold 1/sqrt(d)
# ----------------------------------------------------------------------------
def prepare_params(params, embed_dim, num_heads):
    d_head = embed_dim // num_heads
    scale = 1.0 / (d_head ** 0.5)
    kp = {}
    for name, p in params.items():
        s = scale if name == "W_q" else 1.0            # fold q scaling into W_q / b_q
        kp[name] = {
            "w_t": (p["w"].T * s).astype(jnp.bfloat16),          # (in, out) bf16
            "b": (p["b"] * s).astype(jnp.float32).reshape(1, -1),
        }
    return kp


# ----------------------------------------------------------------------------
# MultiHeadAttention forward (glue in JAX, hot paths in Pallas)
# ----------------------------------------------------------------------------
def multi_head_attention(kparams, Q, K, V, mask, num_heads):
    bs, seq, embed = Q.shape
    assert embed % num_heads == 0
    d_head = embed // num_heads
    cdt = jnp.bfloat16  # matmul operand dtype; accumulation stays f32

    def proj(x, p, out_dtype):
        y = linear(x.reshape(bs * seq, embed).astype(cdt), p["w_t"], p["b"],
                   out_dtype=out_dtype)
        return y.reshape(bs, seq, embed)

    def split_heads(x):
        return x.reshape(bs, seq, num_heads, d_head).transpose(0, 2, 1, 3)

    # TODO(synk): when Q is K is V (self-attention), fuse the three projections
    # into one (E, 3E) matmul so the activations are read from HBM once.
    q = split_heads(proj(Q, kparams["W_q"], cdt))      # scale already folded into W_q
    k = split_heads(proj(K, kparams["W_k"], cdt))
    v = split_heads(proj(V, kparams["W_v"], cdt))

    # compact int8 mask (nonzero == masked); broadcast over heads via the BlockSpec
    # TODO(synk): for pure key-padding masks, pass valid_lens via scalar prefetch
    # and build the mask in-kernel with broadcasted_iota to avoid (B,S,S) HBM traffic.
    mask_i8 = mask.astype(jnp.int8)

    ctx, attn_prob = scaled_dot_product_attention(q, k, v, mask_i8)

    ctx = ctx.transpose(0, 2, 1, 3).reshape(bs, seq, embed)   # merge heads
    out = proj(ctx, kparams["W_o"], jnp.float32)
    return out, attn_prob


# ----------------------------------------------------------------------------
# Deterministic parameter init (same shapes as nn.Linear(embed, embed))
# ----------------------------------------------------------------------------
def init_params(key, embed_dim):
    names = ["W_q", "W_k", "W_v", "W_o"]
    params = {}
    for i, name in enumerate(names):
        kw, kb = jax.random.split(jax.random.fold_in(key, i))
        bound = 1.0 / jnp.sqrt(embed_dim)
        params[name] = {
            "w": jax.random.uniform(kw, (embed_dim, embed_dim), jnp.float32, -bound, bound),
            "b": jax.random.uniform(kb, (embed_dim,), jnp.float32, -bound, bound),
        }
    return params


# ----------------------------------------------------------------------------
# Pure-JAX f32 reference (mirrors the PyTorch module exactly)
# ----------------------------------------------------------------------------
def reference_mha(params, Q, K, V, mask, num_heads):
    bs, seq, embed = Q.shape
    d_head = embed // num_heads

    def lin(x, p):
        return x @ p["w"].T + p["b"]

    def split(x):
        return x.reshape(bs, seq, num_heads, d_head).transpose(0, 2, 1, 3)

    q, k, v = split(lin(Q, params["W_q"])), split(lin(K, params["W_k"])), split(lin(V, params["W_v"]))
    scores = jnp.einsum("bhqd,bhkd->bhqk", q, k) / jnp.sqrt(jnp.float32(d_head))
    scores = jnp.where(mask[:, None, :, :], -jnp.inf, scores)
    prob = jax.nn.softmax(scores, axis=-1)
    ctx = jnp.einsum("bhqk,bhkd->bhqd", prob, v).transpose(0, 2, 1, 3).reshape(bs, seq, embed)
    out = lin(ctx, params["W_o"])
    return out, prob


if __name__ == "__main__":
    key = jax.random.PRNGKey(0)

    batch = 2
    seq = 8
    embed_dim = 32
    num_heads = 4

    kp_, kq, kk, kv = jax.random.split(key, 4)
    params = init_params(kp_, embed_dim)
    kparams = prepare_params(params, embed_dim, num_heads)   # once, outside jit

    Q = jax.random.normal(kq, (batch, seq, embed_dim), jnp.float32)
    K = jax.random.normal(kk, (batch, seq, embed_dim), jnp.float32)
    V = jax.random.normal(kv, (batch, seq, embed_dim), jnp.float32)

    # padding-style boolean mask: mask[b, q, k] = True -> masked
    valid_lens = jnp.array([seq, seq - 2], dtype=jnp.int32)
    key_pos = jnp.arange(seq)[None, None, :]                  # (1, 1, S)
    mask = jnp.broadcast_to(key_pos >= valid_lens[:, None, None], (batch, seq, seq))

    fwd = jax.jit(functools.partial(multi_head_attention, num_heads=num_heads))
    out, attn_prob = fwd(kparams, Q, K, V, mask)
    jax.block_until_ready((out, attn_prob))

    assert out.shape == (batch, seq, embed_dim)
    assert attn_prob.shape == (batch, num_heads, seq, seq)

    # rows of attn_prob must sum to ~1 (exact reciprocal in the kernel)
    assert jnp.allclose(attn_prob.sum(-1), 1.0, atol=1e-2)

    # compare against the f32 reference (kernel uses bf16 matmul operands)
    out_ref, prob_ref = reference_mha(params, Q, K, V, mask, num_heads)
    out_err = float(jnp.max(jnp.abs(out - out_ref)))
    prob_err = float(jnp.max(jnp.abs(attn_prob - prob_ref)))
    assert out_err < 0.2, f"context max abs err {out_err}"
    assert prob_err < 0.1, f"prob max abs err {prob_err}"

    print("KERNEL_OK")
</pallas_src>

<mosaic_0001>
module attributes {stable_mosaic.version = 11 : i64} {
  func.func @linear_kernel(%arg0: i32, %arg1: memref<16x32xbf16, #tpu.memory_space<vmem>>, %arg2: memref<32x32xbf16, #tpu.memory_space<vmem>>, %arg3: memref<1x32xf32, #tpu.memory_space<vmem>>, %arg4: memref<16x32xbf16, #tpu.memory_space<vmem>>) attributes {dimension_semantics = [#tpu.dimension_semantics<parallel>], iteration_bounds = array<i64: 1>, scalar_prefetch = 0 : i64, scratch_operands = 0 : i64, tpu.core_type = #tpu.core_type<tc>, window_params = [{transform_indices = @transform_0, window_bounds = array<i64: 16, 32>}, {pipeline_mode = #tpu.pipeline_mode<synchronous>, transform_indices = @transform_1, window_bounds = array<i64: 32, 32>}, {pipeline_mode = #tpu.pipeline_mode<synchronous>, transform_indices = @transform_2, window_bounds = array<i64: 1, 32>}, {transform_indices = @transform_3, window_bounds = array<i64: 16, 32>}]} {
    %c0 = arith.constant 0 : index
    %c0_0 = arith.constant 0 : index
    %0 = vector.load %arg1[%c0, %c0_0] : memref<16x32xbf16, #tpu.memory_space<vmem>>, vector<16x32xbf16>
    %c0_1 = arith.constant 0 : index
    %c0_2 = arith.constant 0 : index
    %1 = vector.load %arg2[%c0_1, %c0_2] : memref<32x32xbf16, #tpu.memory_space<vmem>>, vector<32x32xbf16>
    %cst = arith.constant dense<0.000000e+00> : vector<16x32xf32>
    %2 = tpu.matmul %0, %1, %cst {dimension_numbers = #tpu.dot_dimension_numbers<[1], [0], [0], [1], [0, 0, 1, 1], [], []>} : vector<16x32xbf16>, vector<32x32xbf16>, vector<16x32xf32> -> vector<16x32xf32>
    %c0_3 = arith.constant 0 : index
    %c0_4 = arith.constant 0 : index
    %3 = vector.load %arg3[%c0_3, %c0_4] : memref<1x32xf32, #tpu.memory_space<vmem>>, vector<1x32xf32>
    %4 = vector.broadcast %3 : vector<1x32xf32> to vector<16x32xf32>
    %5 = arith.addf %2, %4 : vector<16x32xf32>
    %6 = arith.truncf %5 : vector<16x32xf32> to vector<16x32xbf16>
    %c0_5 = arith.constant 0 : index
    %c0_6 = arith.constant 0 : index
    %7 = vector.load %arg4[%c0_5, %c0_6] : memref<16x32xbf16, #tpu.memory_space<vmem>>, vector<16x32xbf16>
    tpu.vector_store %arg4[%c0_5, %c0_6], %6 {strides = array<i32>} : memref<16x32xbf16, #tpu.memory_space<vmem>>, vector<16x32xbf16>,
    return
  }
  func.func @transform_0(%arg0: i32) -> (i32, i32) {
    %c0_i32 = arith.constant 0 : i32
    %c0_i32_0 = arith.constant 0 : i32
    return %arg0, %c0_i32 : i32, i32
  }
  func.func @transform_1(%arg0: i32) -> (i32, i32) {
    %c0_i32 = arith.constant 0 : i32
    %c0_i32_0 = arith.constant 0 : i32
    %c0_i32_1 = arith.constant 0 : i32
    return %c0_i32, %c0_i32_0 : i32, i32
  }
  func.func @transform_2(%arg0: i32) -> (i32, i32) {
    %c0_i32 = arith.constant 0 : i32
    %c0_i32_0 = arith.constant 0 : i32
    %c0_i32_1 = arith.constant 0 : i32
    return %c0_i32, %c0_i32_0 : i32, i32
  }
  func.func @transform_3(%arg0: i32) -> (i32, i32) {
    %c0_i32 = arith.constant 0 : i32
    %c0_i32_0 = arith.constant 0 : i32
    return %arg0, %c0_i32 : i32, i32
  }
}

module attributes {stable_mosaic.version = 11 : i64} {
  func.func @linear_kernel(%arg0: i32, %arg1: memref<16x32xbf16, #tpu.memory_space<vmem>>, %arg2: memref<32x32xbf16, #tpu.memory_space<vmem>>, %arg3: memref<1x32xf32, #tpu.memory_space<vmem>>, %arg4: memref<16x32xbf16, #tpu.memory_space<vmem>>) attributes {dimension_semantics = [#tpu.dimension_semantics<parallel>], iteration_bounds = array<i64: 1>, scalar_prefetch = 0 : i64, scratch_operands = 0 : i64, tpu.core_type = #tpu.core_type<tc>, window_params = [{transform_indices = @transform_0, window_bounds = array<i64: 16, 32>}, {pipeline_mode = #tpu.pipeline_mode<synchronous>, transform_indices = @transform_1, window_bounds = array<i64: 32, 32>}, {pipeline_mode = #tpu.pipeline_mode<synchronous>, transform_indices = @transform_2, window_bounds = array<i64: 1, 32>}, {transform_indices = @transform_3, window_bounds = array<i64: 16, 32>}]} {
    %c0 = arith.constant 0 : index
    %c0_0 = arith.constant 0 : index
    %0 = vector.load %arg1[%c0, %c0_0] : memref<16x32xbf16, #tpu.memory_space<vmem>>, vector<16x32xbf16>
    %c0_1 = arith.constant 0 : index
    %c0_2 = arith.constant 0 : index
    %1 = vector.load %arg2[%c0_1, %c0_2] : memref<32x32xbf16, #tpu.memory_space<vmem>>, vector<32x32xbf16>
    %cst = arith.constant dense<0.000000e+00> : vector<16x32xf32>
    %2 = tpu.matmul %0, %1, %cst {dimension_numbers = #tpu.dot_dimension_numbers<[1], [0], [0], [1], [0, 0, 1, 1], [], []>} : vector<16x32xbf16>, vector<32x32xbf16>, vector<16x32xf32> -> vector<16x32xf32>
    %c0_3 = arith.constant 0 : index
    %c0_4 = arith.constant 0 : index
    %3 = vector.load %arg3[%c0_3, %c0_4] : memref<1x32xf32, #tpu.memory_space<vmem>>, vector<1x32xf32>
    %4 = vector.broadcast %3 : vector<1x32xf32> to vector<16x32xf32>
    %5 = arith.addf %2, %4 : vector<16x32xf32>
    %6 = arith.truncf %5 : vector<16x32xf32> to vector<16x32xbf16>
    %c0_5 = arith.constant 0 : index
    %c0_6 = arith.constant 0 : index
    %7 = vector.load %arg4[%c0_5, %c0_6] : memref<16x32xbf16, #tpu.memory_space<vmem>>, vector<16x32xbf16>
    tpu.vector_store %arg4[%c0_5, %c0_6], %6 {strides = array<i32>} : memref<16x32xbf16, #tpu.memory_space<vmem>>, vector<16x32xbf16>,
    return
  }
  func.func @transform_0(%arg0: i32) -> (i32, i32) {
    %c0_i32 = arith.constant 0 : i32
    %c0_i32_0 = arith.constant 0 : i32
    return %arg0, %c0_i32 : i32, i32
  }
  func.func @transform_1(%arg0: i32) -> (i32, i32) {
    %c0_i32 = arith.constant 0 : i32
    %c0_i32_0 = arith.constant 0 : i32
    %c0_i32_1 = arith.constant 0 : i32
    return %c0_i32, %c0_i32_0 : i32, i32
  }
  func.func @transform_2(%arg0: i32) -> (i32, i32) {
    %c0_i32 = arith.constant 0 : i32
    %c0_i32_0 = arith.constant 0 : i32
    %c0_i32_1 = arith.constant 0 : i32
    return %c0_i32, %c0_i32_0 : i32, i32
  }
  func.func @transform_3(%arg0: i32) -> (i32, i32) {
    %c0_i32 = arith.constant 0 : i32
    %c0_i32_0 = arith.constant 0 : i32
    return %arg0, %c0_i32 : i32, i32
  }
}

module attributes {stable_mosaic.version = 11 : i64} {
  func.func @attn_kernel(%arg0: i32, %arg1: i32, %arg2: i32, %arg3: memref<1x1x8x8xbf16, #tpu.memory_space<vmem>>, %arg4: memref<1x1x8x8xbf16, #tpu.memory_space<vmem>>, %arg5: memref<1x1x8x8xbf16, #tpu.memory_space<vmem>>, %arg6: memref<1x8x8xi8, #tpu.memory_space<vmem>>, %arg7: memref<1x1x8x8xbf16, #tpu.memory_space<vmem>>, %arg8: memref<1x1x8x8xf32, #tpu.memory_space<vmem>>) attributes {dimension_semantics = [#tpu.dimension_semantics<parallel>, #tpu.dimension_semantics<parallel>, #tpu.dimension_semantics<parallel>], iteration_bounds = array<i64: 2, 4, 1>, scalar_prefetch = 0 : i64, scratch_operands = 0 : i64, tpu.core_type = #tpu.core_type<tc>, window_params = [{transform_indices = @transform_0, window_bounds = array<i64: 1, 1, 8, 8>}, {transform_indices = @transform_1, window_bounds = array<i64: 1, 1, 8, 8>}, {transform_indices = @transform_2, window_bounds = array<i64: 1, 1, 8, 8>}, {transform_indices = @transform_3, window_bounds = array<i64: 1, 8, 8>}, {transform_indices = @transform_4, window_bounds = array<i64: 1, 1, 8, 8>}, {transform_indices = @transform_5, window_bounds = array<i64: 1, 1, 8, 8>}]} {
    %c0 = arith.constant 0 : index
    %c0_0 = arith.constant 0 : index
    %c0_1 = arith.constant 0 : index
    %c0_2 = arith.constant 0 : index
    %0 = vector.load %arg3[%c0, %c0_0, %c0_1, %c0_2] : memref<1x1x8x8xbf16, #tpu.memory_space<vmem>>, vector<1x1x8x8xbf16>
    %1 = vector.shape_cast %0 : vector<1x1x8x8xbf16> to vector<8x8xbf16>
    %c0_3 = arith.constant 0 : index
    %c0_4 = arith.constant 0 : index
    %c0_5 = arith.constant 0 : index
    %c0_6 = arith.constant 0 : index
    %2 = vector.load %arg4[%c0_3, %c0_4, %c0_5, %c0_6] : memref<1x1x8x8xbf16, #tpu.memory_space<vmem>>, vector<1x1x8x8xbf16>
    %3 = vector.shape_cast %2 : vector<1x1x8x8xbf16> to vector<8x8xbf16>
    %c0_7 = arith.constant 0 : index
    %c0_8 = arith.constant 0 : index
    %c0_9 = arith.constant 0 : index
    %c0_10 = arith.constant 0 : index
    %4 = vector.load %arg5[%c0_7, %c0_8, %c0_9, %c0_10] : memref<1x1x8x8xbf16, #tpu.memory_space<vmem>>, vector<1x1x8x8xbf16>
    %5 = vector.shape_cast %4 : vector<1x1x8x8xbf16> to vector<8x8xbf16>
    %c0_11 = arith.constant 0 : index
    %c0_12 = arith.constant 0 : index
    %c0_13 = arith.constant 0 : index
    %6 = vector.load %arg6[%c0_11, %c0_12, %c0_13] : memref<1x8x8xi8, #tpu.memory_space<vmem>>, vector<1x8x8xi8>
    %7 = vector.shape_cast %6 : vector<1x8x8xi8> to vector<8x8xi8>
    %c0_i8 = arith.constant 0 : i8
    %8 = vector.broadcast %c0_i8 : i8 to vector<8x8xi8>
    %9 = arith.cmpi ne, %7, %8 : vector<8x8xi8>
    %cst = arith.constant dense<0.000000e+00> : vector<8x8xf32>
    %10 = tpu.matmul %1, %3, %cst {dimension_numbers = #tpu.dot_dimension_numbers<[1], [1], [0], [0], [0, 0, 1, 0], [], []>} : vector<8x8xbf16>, vector<8x8xbf16>, vector<8x8xf32> -> vector<8x8xf32>
    %cst_14 = arith.constant -1.000000e+30 : f32
    %11 = vector.broadcast %cst_14 : f32 to vector<8x8xf32>
    %12 = arith.select %9, %11, %10 : vector<8x8xi1>, vector<8x8xf32>
    %cst_15 = arith.constant dense<0xFF800000> : vector<8xf32>
    %13 = vector.multi_reduction <maximumf>, %12, %cst_15 [1] : vector<8x8xf32> to vector<8xf32>
    %14 = vector.shape_cast %13 : vector<8xf32> to vector<8x1xf32>
    %15 = vector.broadcast %14 : vector<8x1xf32> to vector<8x8xf32>
    %16 = arith.subf %12, %15 : vector<8x8xf32>
    %17 = math.exp %16 : vector<8x8xf32>
    %cst_16 = arith.constant dense<0.000000e+00> : vector<8xf32>
    %18 = vector.multi_reduction <add>, %17, %cst_16 [1] : vector<8x8xf32> to vector<8xf32>
    %19 = vector.shape_cast %18 : vector<8xf32> to vector<8x1xf32>
    %20 = tpu.reciprocal %19 : vector<8x1xf32> -> vector<8x1xf32>
    %21 = vector.broadcast %20 : vector<8x1xf32> to vector<8x8xf32>
    %22 = arith.mulf %17, %21 : vector<8x8xf32>
    %c0_17 = arith.constant 0 : index
    %c0_18 = arith.constant 0 : index
    %c0_19 = arith.constant 0 : index
    %c0_20 = arith.constant 0 : index
    %23 = vector.load %arg8[%c0_17, %c0_18, %c0_19, %c0_20] : memref<1x1x8x8xf32, #tpu.memory_space<vmem>>, vector<1x1x8x8xf32>
    %24 = vector.shape_cast %23 : vector<1x1x8x8xf32> to vector<8x8xf32>
    %25 = vector.shape_cast %22 : vector<8x8xf32> to vector<1x1x8x8xf32>
    tpu.vector_store %arg8[%c0_17, %c0_18, %c0_19, %c0_20], %25 {strides = array<i32>} : memref<1x1x8x8xf32, #tpu.memory_space<vmem>>, vector<1x1x8x8xf32>,
    %26 = arith.truncf %22 : vector<8x8xf32> to vector<8x8xbf16>
    %cst_21 = arith.constant dense<0.000000e+00> : vector<8x8xf32>
    %27 = tpu.matmul %26, %5, %cst_21 {dimension_numbers = #tpu.dot_dimension_numbers<[1], [0], [0], [1], [0, 0, 1, 1], [], []>} : vector<8x8xbf16>, vector<8x8xbf16>, vector<8x8xf32> -> vector<8x8xf32>
    %28 = arith.truncf %27 : vector<8x8xf32> to vector<8x8xbf16>
    %c0_22 = arith.constant 0 : index
    %c0_23 = arith.constant 0 : index
    %c0_24 = arith.constant 0 : index
    %c0_25 = arith.constant 0 : index
    %29 = vector.load %arg7[%c0_22, %c0_23, %c0_24, %c0_25] : memref<1x1x8x8xbf16, #tpu.memory_space<vmem>>, vector<1x1x8x8xbf16>
    %30 = vector.shape_cast %29 : vector<1x1x8x8xbf16> to vector<8x8xbf16>
    %31 = vector.shape_cast %28 : vector<8x8xbf16> to vector<1x1x8x8xbf16>
    tpu.vector_store %arg7[%c0_22, %c0_23, %c0_24, %c0_25], %31 {strides = array<i32>} : memref<1x1x8x8xbf16, #tpu.memory_space<vmem>>, vector<1x1x8x8xbf16>,
    return
  }
  func.func @transform_0(%arg0: i32, %arg1: i32, %arg2: i32) -> (i32, i32, i32, i32) {
    %c0_i32 = arith.constant 0 : i32
    %c0_i32_0 = arith.constant 0 : i32
    return %arg0, %arg1, %arg2, %c0_i32 : i32, i32, i32, i32
  }
  func.func @transform_1(%arg0: i32, %arg1: i32, %arg2: i32) -> (i32, i32, i32, i32) {
    %c0_i32 = arith.constant 0 : i32
    %c0_i32_0 = arith.constant 0 : i32
    %c0_i32_1 = arith.constant 0 : i32
    return %arg0, %arg1, %c0_i32, %c0_i32_0 : i32, i32, i32, i32
  }
  func.func @transform_2(%arg0: i32, %arg1: i32, %arg2: i32) -> (i32, i32, i32, i32) {
    %c0_i32 = arith.constant 0 : i32
    %c0_i32_0 = arith.constant 0 : i32
    %c0_i32_1 = arith.constant 0 : i32
    return %arg0, %arg1, %c0_i32, %c0_i32_0 : i32, i32, i32, i32
  }
  func.func @transform_3(%arg0: i32, %arg1: i32, %arg2: i32) -> (i32, i32, i32) {
    %c0_i32 = arith.constant 0 : i32
    %c0_i32_0 = arith.constant 0 : i32
    return %arg0, %arg2, %c0_i32 : i32, i32, i32
  }
  func.func @transform_4(%arg0: i32, %arg1: i32, %arg2: i32) -> (i32, i32, i32, i32) {
    %c0_i32 = arith.constant 0 : i32
    %c0_i32_0 = arith.constant 0 : i32
    return %arg0, %arg1, %arg2, %c0_i32 : i32, i32, i32, i32
  }
  func.func @transform_5(%arg0: i32, %arg1: i32, %arg2: i32) -> (i32, i32, i32, i32) {
    %c0_i32 = arith.constant 0 : i32
    %c0_i32_0 = arith.constant 0 : i32
    return %arg0, %arg1, %arg2, %c0_i32 : i32, i32, i32, i32
  }
}

module attributes {stable_mosaic.version = 11 : i64} {
  func.func @linear_kernel(%arg0: i32, %arg1: memref<16x32xbf16, #tpu.memory_space<vmem>>, %arg2: memref<32x32xbf16, #tpu.memory_space<vmem>>, %arg3: memref<1x32xf32, #tpu.memory_space<vmem>>, %arg4: memref<16x32xf32, #tpu.memory_space<vmem>>) attributes {dimension_semantics = [#tpu.dimension_semantics<parallel>], iteration_bounds = array<i64: 1>, scalar_prefetch = 0 : i64, scratch_operands = 0 : i64, tpu.core_type = #tpu.core_type<tc>, window_params = [{transform_indices = @transform_0, window_bounds = array<i64: 16, 32>}, {pipeline_mode = #tpu.pipeline_mode<synchronous>, transform_indices = @transform_1, window_bounds = array<i64: 32, 32>}, {pipeline_mode = #tpu.pipeline_mode<synchronous>, transform_indices = @transform_2, window_bounds = array<i64: 1, 32>}, {transform_indices = @transform_3, window_bounds = array<i64: 16, 32>}]} {
    %c0 = arith.constant 0 : index
    %c0_0 = arith.constant 0 : index
    %0 = vector.load %arg1[%c0, %c0_0] : memref<16x32xbf16, #tpu.memory_space<vmem>>, vector<16x32xbf16>
    %c0_1 = arith.constant 0 : index
    %c0_2 = arith.constant 0 : index
    %1 = vector.load %arg2[%c0_1, %c0_2] : memref<32x32xbf16, #tpu.memory_space<vmem>>, vector<32x32xbf16>
    %cst = arith.constant dense<0.000000e+00> : vector<16x32xf32>
    %2 = tpu.matmul %0, %1, %cst {dimension_numbers = #tpu.dot_dimension_numbers<[1], [0], [0], [1], [0, 0, 1, 1], [], []>} : vector<16x32xbf16>, vector<32x32xbf16>, vector<16x32xf32> -> vector<16x32xf32>
    %c0_3 = arith.constant 0 : index
    %c0_4 = arith.constant 0 : index
    %3 = vector.load %arg3[%c0_3, %c0_4] : memref<1x32xf32, #tpu.memory_space<vmem>>, vector<1x32xf32>
    %4 = vector.broadcast %3 : vector<1x32xf32> to vector<16x32xf32>
    %5 = arith.addf %2, %4 : vector<16x32xf32>
    %c0_5 = arith.constant 0 : index
    %c0_6 = arith.constant 0 : index
    %6 = vector.load %arg4[%c0_5, %c0_6] : memref<16x32xf32, #tpu.memory_space<vmem>>, vector<16x32xf32>
    tpu.vector_store %arg4[%c0_5, %c0_6], %5 {strides = array<i32>} : memref<16x32xf32, #tpu.memory_space<vmem>>, vector<16x32xf32>,
    return
  }
  func.func @transform_0(%arg0: i32) -> (i32, i32) {
    %c0_i32 = arith.constant 0 : i32
    %c0_i32_0 = arith.constant 0 : i32
    return %arg0, %c0_i32 : i32, i32
  }
  func.func @transform_1(%arg0: i32) -> (i32, i32) {
    %c0_i32 = arith.constant 0 : i32
    %c0_i32_0 = arith.constant 0 : i32
    %c0_i32_1 = arith.constant 0 : i32
    return %c0_i32, %c0_i32_0 : i32, i32
  }
  func.func @transform_2(%arg0: i32) -> (i32, i32) {
    %c0_i32 = arith.constant 0 : i32
    %c0_i32_0 = arith.constant 0 : i32
    %c0_i32_1 = arith.constant 0 : i32
    return %c0_i32, %c0_i32_0 : i32, i32
  }
  func.func @transform_3(%arg0: i32) -> (i32, i32) {
    %c0_i32 = arith.constant 0 : i32
    %c0_i32_0 = arith.constant 0 : i32
    return %arg0, %c0_i32 : i32, i32
  }
}

</mosaic_0001>

<llo_original>
// kernel: multi_head_attention.5
$region0: #{multi_head_attention.5}
  #allocation0 [shape = 'u32[]', space=smem, size = 0x4, offset = 0x4, fixed_abs, tag = 'smem constant byte address 0x4 - core index']
  #allocation1 [shape = 'u32[72,128]{1,0:T(1,128)}', space=vmem, size = 0x9000, scoped, tag = 'internal scratch']
  %s0 = inlined_call_operand.vmem [shape: bf16[16,32], index: 0, kind: input, shape index: {}]
  %s1 = inlined_call_operand.vmem [shape: bf16[32,32], index: 1, kind: input, shape index: {}]
  %s2 = inlined_call_operand.vmem [shape: f32[1,32], index: 2, kind: input, shape index: {}]
  %s3 = inlined_call_operand.vmem [shape: bf16[16,32], index: 3, kind: output, shape index: {}]
  %s4 = sld [smem:[#allocation0]]
  $region22: #{multi_head_attention.5} parent=0
    _
  %s6 = ssub.s32 1, %s4
  %s7 = scalar_select 0, %s6, %s4
  // Predicated region
  $region2: #{multi_head_attention.5} parent=0 // pred_check
    _
  $region3: #{multi_head_attention.5} parent=0 // pred_check_branch
    %9 = sbr.rel (0) target = $region5
  $region4: #{multi_head_attention.5} parent=0 // pred_region
    _
  $region5: #{multi_head_attention.5} parent=0 // pred_fallthru
    _
  // Predicated region
  $region6: #{multi_head_attention.5} parent=0 // pred_check
    _
  $region7: #{multi_head_attention.5} parent=0 // pred_check_branch
    %11 = sbr.rel (0) target = $region9
  $region8: #{multi_head_attention.5} parent=0 // pred_region
    _
  $region9: #{multi_head_attention.5} parent=0 // pred_fallthru
    _
  // Predicated region
  $region10: #{multi_head_attention.5} parent=0 // pred_check
    _
  $region11: #{multi_head_attention.5} parent=0 // pred_check_branch
    %13 = sbr.rel (0) target = $region13
  $region12: #{multi_head_attention.5} parent=0 // pred_region
    _
  $region13: #{multi_head_attention.5} parent=0 // pred_fallthru
    _
  %v15 = vld [vmem:[%s0] sm:$0xf]
  %v16 = vld [vmem:[%s0 + $0x4] sm:$0xf]
  %v17 = vld [vmem:[%s1] sm:$0xf]
  %v18 = vld [vmem:[%s1 + $0x4] sm:$0xf]
  %v19 = vld [vmem:[%s1 + $0x8] sm:$0xf]
  %v20 = vld [vmem:[%s1 + $0xc] sm:$0xf]
  %v21 = vld [vmem:[%s2] sm:$0x1]
  %v23 = vperm.slane %v21, 0
  %v27 = vunpack.c.l.b16 %v15
  %v28 = vunpack.c.l.b16 %v16
  %v29 = vpack.c.b16 %v28, %v27
  %v34 = vunpack.c.l.b16 %v17
  %v35 = vunpack.c.l.b16 %v18
  %v36 = vunpack.c.l.b16 %v19
  %v37 = vunpack.c.l.b16 %v20
  %v38 = vpack.c.b16 %v35, %v34
  %v39 = vpack.c.b16 %v37, %v36
  %vm42 = vcmask 261120
  %v44 = vsel %vm42, %v29, 0
  %46 = vmatpush.bf16.msra.mxu0 0
  %47 = vmatpush.bf16.msra.mxu0 0
  %48 = vmatpush.bf16.msra.mxu0 0
  %49 = vmatpush.bf16.msra.mxu0 0
  %50 = vmatpush.bf16.msra.mxu0 0
  %51 = vmatpush.bf16.msra.mxu0 0
  %52 = vmatpush.bf16.msra.mxu0 %v39
  %53 = vmatpush.bf16.msra.mxu0 %v38
  %54 = vmatmul.bf16.gmra.mxu0 %v44
  %v55 = vpop.f32.mrf.mxu0
  %v56 = vadd.f32 %v23, %v55
  %v57 = vpop.f32.mrf.mxu0
  %v58 = vadd.f32 %v23, %v57
  %59 = vdwg.mxu0
  %v60 = vpack.c.bf16 %v56, %v56
  %v61 = vpack.c.bf16 %v58, %v58
  %vm62 = vcmask 257024
  %63 = vst.msk [vmem:[%s3] sm:$0xf] %vm62, %v60
  %64 = vst.msk [vmem:[%s3 + $0x4] sm:$0xf] %vm62, %v61
  // Predicated region
  $region14: #{multi_head_attention.5} parent=0 // pred_check
    _
  $region15: #{multi_head_attention.5} parent=0 // pred_check_branch
    %66 = sbr.rel (0) target = $region17
  $region16: #{multi_head_attention.5} parent=0 // pred_region
    _
  $region17: #{multi_head_attention.5} parent=0 // pred_fallthru
    _
  // Predicated region
  $region18: #{multi_head_attention.5} parent=0 // pred_check
    _
  $region19: #{multi_head_attention.5} parent=0 // pred_check_branch
    %68 = sbr.rel (0) target = $region21
  $region20: #{multi_head_attention.5} parent=0 // pred_region
    _
  $region21: #{multi_head_attention.5} parent=0 // pred_fallthru
    _

// kernel: multi_head_attention.8
$region0: #{multi_head_attention.8}
  #allocation0 [shape = 'u32[]', space=smem, size = 0x4, offset = 0x4, fixed_abs, tag = 'smem constant byte address 0x4 - core index']
  #allocation1 [shape = 'u32[72,128]{1,0:T(1,128)}', space=vmem, size = 0x9000, scoped, tag = 'internal scratch']
  %s0 = inlined_call_operand.vmem [shape: bf16[2,4,8,8], index: 0, kind: input, shape index: {}]
  %s1 = inlined_call_operand.vmem [shape: bf16[2,4,8,8], index: 1, kind: input, shape index: {}]
  %s2 = inlined_call_operand.vmem [shape: bf16[2,4,8,8], index: 2, kind: input, shape index: {}]
  %s3 = inlined_call_operand.vmem [shape: s8[2,8,8], index: 3, kind: input, shape index: {}]
  %s4 = inlined_call_operand.vmem [shape: bf16[2,4,8,8], index: 4, kind: output, shape index: {0}]
  %s5 = inlined_call_operand.hbm [shape: f32[2,4,8,8], index: 5, kind: output, shape index: {1}]
  %6 = xla_tuple %s4, %s5
  %s7 = sld [smem:[#allocation0]]
  $region57: #{multi_head_attention.8} parent=0
    _
  %s9 = ssub.s32 1, %s7
  %s10 = scalar_select 0, %s9, %s7
  $region1: #{multi_head_attention.8} parent=0
    #allocation2 [shape = 'u8[8192]{0}', space=vmem, size = 0x2000, scoped, tag = 'output window, operand 1']
    #allocation3 [shape = 's32[2]{0}', space=sflag, size = 0x8, scoped, tag = 'scoped memory for multi_head_attention.8']
    %11 = vsyncpa [#allocation3], 0
    %s12 = scalar_lea.sflag [#allocation3], 1
    %13 = vsyncpa %s12, 0
    loop: start=0, step=1, limit=10
    $region2: #{multi_head_attention.8} parent=1 // loop_pre_header
      _
    $region3: #{multi_head_attention.8} parent=1 // loop_header
      %s15 = sphi 0, %s19
      %p16 = scmp.ge.s32.totalorder %s15, 10
      %s22 = sphi 0, %s41
      %s23 = sphi 0, %s37
      %s24 = sphi 0, %s33
      %s25 = sphi 0, %s22
      %s26 = sphi 0, %s23
      %s27 = sphi 0, %s24
      %s28 = sphi 0, %s25
      %s29 = sphi 0, %s26
      %s30 = sphi 0, %s27
      %s48 = sphi 0, %s50
      %s51 = sphi 0, %s48
      %s52 = sphi 0, %s51
      %s68 = sphi 0, %s52
      %s76 = sphi 0, %s78
      %s79 = sphi 0, %s76
      %s80 = sphi 0, %s79
      %s96 = sphi 0, %s80
      %s104 = sphi 0, %s106
      %s107 = sphi 0, %s104
      %s108 = sphi 0, %s107
      %s124 = sphi 0, %s108
      %s132 = sphi 0, %s134
      %s135 = sphi 0, %s132
      %s136 = sphi 0, %s135
      %s152 = sphi 0, %s136
      %s162 = sphi 0, %s164
      %s165 = sphi 0, %s162
      %s166 = sphi 0, %s165
      %s182 = sphi 0, %s166
      %s192 = sphi 0, %s194
      %s195 = sphi 0, %s192
      %s196 = sphi 0, %s195
      %s212 = sphi 0, %s196
    $region4: #{multi_head_attention.8} parent=1 // loop_header_branch
      %18 = sbr.rel (%p16) target = $region8
    $region5: #{multi_head_attention.8} parent=1 // loop_body
      %s20 = ssub.s32 %s15, 1
      %s21 = ssub.s32 %s15, 2
      %s31 = sadd.s32 1, %s24
      %p32 = scmp.ge.s32.totalorder %s31, 1
      %s33 = scalar_select %p32, 0, %s31
      %s34 = sadd.s32 1, %s23
      %s35 = scalar_select %p32, %s34, %s23
      %p36 = scmp.ge.s32.totalorder %s35, 4
      %s37 = scalar_select %p36, 0, %s35
      %s38 = sadd.s32 1, %s22
      %s39 = scalar_select %p36, %s38, %s22
      %p40 = scmp.ge.s32.totalorder %s39, 2
      %s41 = scalar_select %p40, 0, %s39
      %s42 = ssub.s32 %s22, %s41
      %s43 = ssub.s32 %s23, %s37
      %s44 = sor.u32 %s42, %s43
      %s45 = ssub.s32 %s24, %s33
      %s46 = sor.u32 %s44, %s45
      %p47 = scmp.eq.s32.totalorder %s46, 0
      %s49 = sadd.s32 %s48, 1
      %s50 = scalar_select %p47, %s48, %s49
      %p53 = pneg %p47
      %p54 = scmp.eq.s32.totalorder %s15, 7
      %p55 = por %p53, %p54
      %p56 = scmp.ne.s32.totalorder %s48, %s51
      %p57 = scmp.eq.s32.totalorder %s15, 0
      %p58 = por %p56, %p57
      %p59 = scmp.ne.s32.totalorder %s48, %s51
      %p60 = scmp.eq.s32.totalorder %s20, 7
      %p61 = por %p59, %p60
      %p62 = scmp.ne.s32.totalorder %s51, %s52
      %p63 = scmp.eq.s32.totalorder %s20, 0
      %p64 = por %p62, %p63
      %p65 = scmp.ne.s32.totalorder %s51, %s52
      %p66 = scmp.eq.s32.totalorder %s21, 7
      %p67 = por %p65, %p66
      %p69 = scmp.ne.s32.totalorder %s52, %s68
      %p70 = scmp.eq.s32.totalorder %s21, 0
      %p71 = por %p69, %p70
      %s72 = ssub.s32 %s22, %s41
      %s73 = ssub.s32 %s23, %s37
      %s74 = sor.u32 %s72, %s73
      %p75 = scmp.eq.s32.totalorder %s74, 0
      %s77 = sadd.s32 %s76, 1
      %s78 = scalar_select %p75, %s76, %s77
      %p81 = pneg %p75
      %p82 = scmp.eq.s32.totalorder %s15, 7
      %p83 = por %p81, %p82
      %p84 = scmp.ne.s32.totalorder %s76, %s79
      %p85 = scmp.eq.s32.totalorder %s15, 0
      %p86 = por %p84, %p85
      %p87 = scmp.ne.s32.totalorder %s76, %s79
      %p88 = scmp.eq.s32.totalorder %s20, 7
      %p89 = por %p87, %p88
      %p90 = scmp.ne.s32.totalorder %s79, %s80
      %p91 = scmp.eq.s32.totalorder %s20, 0
      %p92 = por %p90, %p91
      %p93 = scmp.ne.s32.totalorder %s79, %s80
      %p94 = scmp.eq.s32.totalorder %s21, 7
      %p95 = por %p93, %p94
      %p97 = scmp.ne.s32.totalorder %s80, %s96
      %p98 = scmp.eq.s32.totalorder %s21, 0
      %p99 = por %p97, %p98
      %s100 = ssub.s32 %s22, %s41
      %s101 = ssub.s32 %s23, %s37
      %s102 = sor.u32 %s100, %s101
      %p103 = scmp.eq.s32.totalorder %s102, 0
      %s105 = sadd.s32 %s104, 1
      %s106 = scalar_select %p103, %s104, %s105
      %p109 = pneg %p103
      %p110 = scmp.eq.s32.totalorder %s15, 7
      %p111 = por %p109, %p110
      %p112 = scmp.ne.s32.totalorder %s104, %s107
      %p113 = scmp.eq.s32.totalorder %s15, 0
      %p114 = por %p112, %p113
      %p115 = scmp.ne.s32.totalorder %s104, %s107
      %p116 = scmp.eq.s32.totalorder %s20, 7
      %p117 = por %p115, %p116
      %p118 = scmp.ne.s32.totalorder %s107, %s108
      %p119 = scmp.eq.s32.totalorder %s20, 0
      %p120 = por %p118, %p119
      %p121 = scmp.ne.s32.totalorder %s107, %s108
      %p122 = scmp.eq.s32.totalorder %s21, 7
      %p123 = por %p121, %p122
      %p125 = scmp.ne.s32.totalorder %s108, %s124
      %p126 = scmp.eq.s32.totalorder %s21, 0
      %p127 = por %p125, %p126
      %s128 = ssub.s32 %s22, %s41
      %s129 = ssub.s32 %s24, %s33
      %s130 = sor.u32 %s128, %s129
      %p131 = scmp.eq.s32.totalorder %s130, 0
      %s133 = sadd.s32 %s132, 1
      %s134 = scalar_select %p131, %s132, %s133
      %p137 = pneg %p131
      %p138 = scmp.eq.s32.totalorder %s15, 7
      %p139 = por %p137, %p138
      %p140 = scmp.ne.s32.totalorder %s132, %s135
      %p141 = scmp.eq.s32.totalorder %s15, 0
      %p142 = por %p140, %p141
      %p143 = scmp.ne.s32.totalorder %s132, %s135
      %p144 = scmp.eq.s32.totalorder %s20, 7
      %p145 = por %p143, %p144
      %p146 = scmp.ne.s32.totalorder %s135, %s136
      %p147 = scmp.eq.s32.totalorder %s20, 0
      %p148 = por %p146, %p147
      %p149 = scmp.ne.s32.totalorder %s135, %s136
      %p150 = scmp.eq.s32.totalorder %s21, 7
      %p151 = por %p149, %p150
      %p153 = scmp.ne.s32.totalorder %s136, %s152
      %p154 = scmp.eq.s32.totalorder %s21, 0
      %p155 = por %p153, %p154
      %s156 = ssub.s32 %s22, %s41
      %s157 = ssub.s32 %s23, %s37
      %s158 = sor.u32 %s156, %s157
      %s159 = ssub.s32 %s24, %s33
      %s160 = sor.u32 %s158, %s159
      %p161 = scmp.eq.s32.totalorder %s160, 0
      %s163 = sadd.s32 %s162, 1
      %s164 = scalar_select %p161, %s162, %s163
      %p167 = pneg %p161
      %p168 = scmp.eq.s32.totalorder %s15, 7
      %p169 = por %p167, %p168
      %p170 = scmp.ne.s32.totalorder %s162, %s165
      %p171 = scmp.eq.s32.totalorder %s15, 0
      %p172 = por %p170, %p171
      %p173 = scmp.ne.s32.totalorder %s162, %s165
      %p174 = scmp.eq.s32.totalorder %s20, 7
      %p175 = por %p173, %p174
      %p176 = scmp.ne.s32.totalorder %s165, %s166
      %p177 = scmp.eq.s32.totalorder %s20, 0
      %p178 = por %p176, %p177
      %p179 = scmp.ne.s32.totalorder %s165, %s166
      %p180 = scmp.eq.s32.totalorder %s21, 7
      %p181 = por %p179, %p180
      %p183 = scmp.ne.s32.totalorder %s166, %s182
      %p184 = scmp.eq.s32.totalorder %s21, 0
      %p185 = por %p183, %p184
      %s186 = ssub.s32 %s22, %s41
      %s187 = ssub.s32 %s23, %s37
      %s188 = sor.u32 %s186, %s187
      %s189 = ssub.s32 %s24, %s33
      %s190 = sor.u32 %s188, %s189
      %p191 = scmp.eq.s32.totalorder %s190, 0
      %s193 = sadd.s32 %s192, 1
      %s194 = scalar_select %p191, %s192, %s193
      %p197 = pneg %p191
      %p198 = scmp.eq.s32.totalorder %s15, 7
      %p199 = por %p197, %p198
      %p200 = scmp.ne.s32.totalorder %s192, %s195
      %p201 = scmp.eq.s32.totalorder %s15, 0
      %p202 = por %p200, %p201
      %p203 = scmp.ne.s32.totalorder %s192, %s195
      %p204 = scmp.eq.s32.totalorder %s20, 7
      %p205 = por %p203, %p204
      %p206 = scmp.ne.s32.totalorder %s195, %s196
      %p207 = scmp.eq.s32.totalorder %s20, 0
      %p208 = por %p206, %p207
      %p209 = scmp.ne.s32.totalorder %s195, %s196
      %p210 = scmp.eq.s32.totalorder %s21, 7
      %p211 = por %p209, %p210
      %p213 = scmp.ne.s32.totalorder %s196, %s212
      %p214 = scmp.eq.s32.totalorder %s21, 0
      %p215 = por %p213, %p214
      %p216 = scmp.le.s32.totalorder 1, %s15
      %p217 = scmp.lt.s32.totalorder %s15, 9
      %p218 = pnand %p216, %p217
      %p219 = pneg %p218
      // Predicated region
      $region9: #{multi_head_attention.8} parent=5 // pred_check
        _
      $region10: #{multi_head_attention.8} parent=5 // pred_check_branch
        %221 = sbr.rel (%p218) target = $region12
      $region11: #{multi_head_attention.8} parent=5 // pred_region
        %s222 = ssub.s32 %s15, 1
      $region12: #{multi_head_attention.8} parent=5 // pred_fallthru
        _
      %p223 = scmp.lt.s32.totalorder %s15, 8
      // Predicated region
      $region13: #{multi_head_attention.8} parent=5 // pred_check
        %p224 = pneg %p223
      $region14: #{multi_head_attention.8} parent=5 // pred_check_branch
        %226 = sbr.rel (%p224) target = $region16
      $region15: #{multi_head_attention.8} parent=5 // pred_region
        // Predicated region
        $region17: #{multi_head_attention.8} parent=15 // pred_check
          %p227 = pneg %p58
        $region18: #{multi_head_attention.8} parent=15 // pred_check_branch
          %229 = sbr.rel (%p227) target = $region20
        $region19: #{multi_head_attention.8} parent=15 // pred_region
          %p230 = scmp.lt.s32.totalorder %s22, 1
          %s231 = scalar_select %p230, %s22, 1
          %p232 = scmp.lt.s32.totalorder %s23, 3
          %s233 = scalar_select %p232, %s23, 3
          %p234 = scmp.lt.s32.totalorder %s24, 0
          %s235 = scalar_select %p234, %s24, 0
          %s236 = sadd.s32 %s235, %s233
          %s237 = smul.addr %s231, 4
          %s238 = sadd.s32 %s236, %s237
          %s239 = smul.addr %s238, 4
          %s240 = scalar_lea.vmem %s0, %s239
        $region20: #{multi_head_attention.8} parent=15 // pred_fallthru
          _
        // Predicated region
        $region21: #{multi_head_attention.8} parent=15 // pred_check
          %p241 = pneg %p86
        $region22: #{multi_head_attention.8} parent=15 // pred_check_branch
          %243 = sbr.rel (%p241) target = $region24
        $region23: #{multi_head_attention.8} parent=15 // pred_region
          %p244 = scmp.lt.s32.totalorder %s22, 1
          %s245 = scalar_select %p244, %s22, 1
          %p246 = scmp.lt.s32.totalorder %s23, 3
          %s247 = scalar_select %p246, %s23, 3
          %s248 = smul.addr %s245, 4
          %s249 = sadd.s32 %s247, %s248
          %s250 = smul.addr %s249, 4
          %s251 = scalar_lea.vmem %s1, %s250
        $region24: #{multi_head_attention.8} parent=15 // pred_fallthru
          _
        // Predicated region
        $region25: #{multi_head_attention.8} parent=15 // pred_check
          %p252 = pneg %p114
        $region26: #{multi_head_attention.8} parent=15 // pred_check_branch
          %254 = sbr.rel (%p252) target = $region28
        $region27: #{multi_head_attention.8} parent=15 // pred_region
          %p255 = scmp.lt.s32.totalorder %s22, 1
          %s256 = scalar_select %p255, %s22, 1
          %p257 = scmp.lt.s32.totalorder %s23, 3
          %s258 = scalar_select %p257, %s23, 3
          %s259 = smul.addr %s256, 4
          %s260 = sadd.s32 %s258, %s259
          %s261 = smul.addr %s260, 4
          %s262 = scalar_lea.vmem %s2, %s261
        $region28: #{multi_head_attention.8} parent=15 // pred_fallthru
          _
        // Predicated region
        $region29: #{multi_head_attention.8} parent=15 // pred_check
          %p263 = pneg %p142
        $region30: #{multi_head_attention.8} parent=15 // pred_check_branch
          %265 = sbr.rel (%p263) target = $region32
        $region31: #{multi_head_attention.8} parent=15 // pred_region
          %p266 = scmp.lt.s32.totalorder %s22, 1
          %s267 = scalar_select %p266, %s22, 1
          %p268 = scmp.lt.s32.totalorder %s24, 0
          %s269 = scalar_select %p268, %s24, 0
          %s270 = sadd.s32 %s269, %s267
          %s271 = smul.addr %s270, 2
          %s272 = scalar_lea.vmem %s3, %s271
        $region32: #{multi_head_attention.8} parent=15 // pred_fallthru
          _
      $region16: #{multi_head_attention.8} parent=5 // pred_fallthru
        _
      %p273 = scmp.le.s32.totalorder 1, %s15
      %p274 = scmp.lt.s32.totalorder %s15, 9
      %p275 = pnand %p273, %p274
      %p276 = pneg %p275
      // Predicated region
      $region33: #{multi_head_attention.8} parent=5 // pred_check
        _
      $region34: #{multi_head_attention.8} parent=5 // pred_check_branch
        %278 = sbr.rel (%p275) target = $region36
      $region35: #{multi_head_attention.8} parent=5 // pred_region
        %s279 = ssub.s32 %s15, 1
        %p280 = scmp.lt.s32.totalorder %s25, 1
        %s281 = scalar_select %p280, %s25, 1
        %p282 = scmp.lt.s32.totalorder %s26, 3
        %s283 = scalar_select %p282, %s26, 3
        %p284 = scmp.lt.s32.totalorder %s27, 0
        %s285 = scalar_select %p284, %s27, 0
        %s286 = sadd.s32 %s285, %s283
        %s287 = smul.addr %s281, 4
        %s288 = sadd.s32 %s286, %s287
        %s289 = smul.addr %s288, 4
        %s290 = scalar_lea.vmem %s0, %s289
        %p291 = pneg %p64
        %p292 = pneg %p61
        %p293 = scmp.lt.s32.totalorder %s25, 1
        %s294 = scalar_select %p293, %s25, 1
        %p295 = scmp.lt.s32.totalorder %s26, 3
        %s296 = scalar_select %p295, %s26, 3
        %s297 = smul.addr %s294, 4
        %s298 = sadd.s32 %s296, %s297
        %s299 = smul.addr %s298, 4
        %s300 = scalar_lea.vmem %s1, %s299
        %p301 = pneg %p92
        %p302 = pneg %p89
        %p303 = scmp.lt.s32.totalorder %s25, 1
        %s304 = scalar_select %p303, %s25, 1
        %p305 = scmp.lt.s32.totalorder %s26, 3
        %s306 = scalar_select %p305, %s26, 3
        %s307 = smul.addr %s304, 4
        %s308 = sadd.s32 %s306, %s307
        %s309 = smul.addr %s308, 4
        %s310 = scalar_lea.vmem %s2, %s309
        %p311 = pneg %p120
        %p312 = pneg %p117
        %p313 = scmp.lt.s32.totalorder %s25, 1
        %s314 = scalar_select %p313, %s25, 1
        %p315 = scmp.lt.s32.totalorder %s27, 0
        %s316 = scalar_select %p315, %s27, 0
        %s317 = sadd.s32 %s316, %s314
        %s318 = smul.addr %s317, 2
        %s319 = scalar_lea.vmem %s3, %s318
        %p320 = pneg %p148
        %p321 = pneg %p145
        %p322 = pneg %p178
        %p323 = pneg %p175
        %p324 = scmp.lt.s32.totalorder %s25, 1
        %s325 = scalar_select %p324, %s25, 1
        %p326 = scmp.lt.s32.totalorder %s26, 3
        %s327 = scalar_select %p326, %s26, 3
        %p328 = scmp.lt.s32.totalorder %s27, 0
        %s329 = scalar_select %p328, %s27, 0
        %s330 = sadd.s32 %s329, %s327
        %s331 = smul.addr %s325, 4
        %s332 = sadd.s32 %s330, %s331
        %s333 = smul.addr %s332, 4
        %s334 = scalar_lea.vmem %s4, %s333
        %p335 = pneg %p208
        %p336 = pneg %p205
        %s337 = sand.u32 %s195, 1
        %s338 = scalar_lea.sflag [#allocation3], %s337
        %s339 = sand.u32 %s195, 1
        %s340 = smul.addr %s339, 8
        %s341 = scalar_lea.vmem [#allocation2], %s340
        %p342 = scmp.lt.s32.totalorder %s25, 1
        %s343 = scalar_select %p342, %s25, 1
        %p344 = scmp.lt.s32.totalorder %s26, 3
        %s345 = scalar_select %p344, %s26, 3
        %p346 = scmp.lt.s32.totalorder %s27, 0
        %s347 = scalar_select %p346, %s27, 0
        %s348 = sadd.s32 %s347, %s345
        %s349 = smul.addr %s343, 4
        %s350 = sadd.s32 %s348, %s349
        %s351 = smul.addr %s350, 4
        %s352 = scalar_lea.vmem %s0, %s351
        %p353 = scmp.lt.s32.totalorder %s25, 1
        %s354 = scalar_select %p353, %s25, 1
        %p355 = scmp.lt.s32.totalorder %s26, 3
        %s356 = scalar_select %p355, %s26, 3
        %s357 = smul.addr %s354, 4
        %s358 = sadd.s32 %s356, %s357
        %s359 = smul.addr %s358, 4
        %s360 = scalar_lea.vmem %s1, %s359
        %p361 = scmp.lt.s32.totalorder %s25, 1
        %s362 = scalar_select %p361, %s25, 1
        %p363 = scmp.lt.s32.totalorder %s26, 3
        %s364 = scalar_select %p363, %s26, 3
        %s365 = smul.addr %s362, 4
        %s366 = sadd.s32 %s364, %s365
        %s367 = smul.addr %s366, 4
        %s368 = scalar_lea.vmem %s2, %s367
        %p369 = scmp.lt.s32.totalorder %s25, 1
        %s370 = scalar_select %p369, %s25, 1
        %p371 = scmp.lt.s32.totalorder %s27, 0
        %s372 = scalar_select %p371, %s27, 0
        %s373 = sadd.s32 %s372, %s370
        %s374 = smul.addr %s373, 2
        %s375 = scalar_lea.vmem %s3, %s374
        %p376 = scmp.lt.s32.totalorder %s25, 1
        %s377 = scalar_select %p376, %s25, 1
        %p378 = scmp.lt.s32.totalorder %s26, 3
        %s379 = scalar_select %p378, %s26, 3
        %p380 = scmp.lt.s32.totalorder %s27, 0
        %s381 = scalar_select %p380, %s27, 0
        %s382 = sadd.s32 %s381, %s379
        %s383 = smul.addr %s377, 4
        %s384 = sadd.s32 %s382, %s383
        %s385 = smul.addr %s384, 4
        %s386 = scalar_lea.vmem %s4, %s385
        %v390 = vld [vmem:[%s352] sm:$0xf]
        %v391 = vld [vmem:[%s360] sm:$0xf]
        %v392 = vld [vmem:[%s368] sm:$0xf]
        %v393 = vld [vmem:[%s375] sm:$0x3]
        %vm394 = vnez %v393
        %vm395 = vcmask 64512
        %v397 = vsel %vm395, %v390, 0
        %v400 = vsel %vm395, %v391, 0
        %402 = vmatpush.bf16.xpose.msra.mxu0 0
        %403 = vmatpush.bf16.xpose.msra.mxu0 0
        %404 = vmatpush.bf16.xpose.msra.mxu0 0
        %405 = vmatpush.bf16.xpose.msra.mxu0 0
        %406 = vmatpush.bf16.xpose.msra.mxu0 0
        %407 = vmatpush.bf16.xpose.msra.mxu0 0
        %408 = vmatpush.bf16.xpose.msra.mxu0 0
        %409 = vmatpush.bf16.xpose.msra.mxu0 %v400
        %410 = vmatmul.bf16.gmra.mxu0 %v397
        %v411 = vpop.f32.mrf.mxu0
        %v412 = vadd.f32 0.0, %v411
        %v413 = vpop.f32.mrf.mxu0
        %414 = vdwg.mxu0
        %v415 = vsel %vm394, 16843009, 0
        %v416 = vunpack.c.0.s8 %v415
        %vm417 = vcmp.ne.s32.totalorder %v416, 0
        %v418 = vsel %vm417, -1e+30, %v412
        %v419 = vsel %vm395, %v418, -inf
        %420 = vmax.xlane.f32.xlu0 %v419
        %v421 = vpop.xlane.xlu0 %420
        %v422 = vsub.f32 %v418, %v421
        %v423 = vmul.f32 %v422, 1.442695
        %v424 = vpow.pop %v423
        %v425 = vsel %vm395, %v424, 0.0
        %426 = vadd.xlane.f32.xlu0 %v425
        %v427 = vpop.xlane.xlu0 %426
        %v428 = vrcp.pop %v427
        %v429 = vmul.f32 %v427, %v428
        %v430 = vsub.f32 1.0, %v429
        %v431 = vmul.f32 %v428, %v430
        %v432 = vadd.f32 %v428, %v431
        %vm433 = vweird.f32 %v427
        %vm434 = vweird.f32 %v428
        %vm435 = vmor %vm433, %vm434
        %v436 = vsel %vm435, %v428, %v432
        %v437 = vand.u32 2147483647, %v427
        %vm438 = vcmp.eq.f32.partialorder %v437, 8.507059e+37
        %v439 = vand.u32 %v427, 2147483648
        %v440 = vor.u32 1.1754944e-38, %v439
        %v441 = vsel %vm438, %v440, %v436
        %v442 = vmul.f32 %v424, %v441
        %443 = vst.msk [vmem:[%s341] sm:$0xff] %vm395, %v442
        %v444 = vpack.c.bf16 %v442, %v442
        %v446 = vsel %vm395, %v444, 0
        %vm448 = vcmask 1043456
        %v450 = vsel %vm448, %v392, 0
        %452 = vmatpush.bf16.msra.mxu0 0
        %453 = vmatpush.bf16.msra.mxu0 0
        %454 = vmatpush.bf16.msra.mxu0 0
        %455 = vmatpush.bf16.msra.mxu0 0
        %456 = vmatpush.bf16.msra.mxu0 0
        %457 = vmatpush.bf16.msra.mxu0 0
        %458 = vmatpush.bf16.msra.mxu0 0
        %459 = vmatpush.bf16.msra.mxu0 %v450
        %460 = vmatmul.bf16.gmra.mxu0 %v446
        %v461 = vpop.f32.mrf.mxu0
        %v462 = vadd.f32 0.0, %v461
        %v463 = vpop.f32.mrf.mxu0
        %464 = vdwg.mxu0
        %v465 = vpack.c.bf16 %v462, %v462
        %vm466 = vcmask 60416
        %467 = vst.msk [vmem:[%s386] sm:$0xf] %vm466, %v465
        %p468 = scmp.lt.s32.totalorder %s25, 1
        %s469 = scalar_select %p468, %s25, 1
        %p470 = scmp.lt.s32.totalorder %s26, 3
        %s471 = scalar_select %p470, %s26, 3
        %p472 = scmp.lt.s32.totalorder %s27, 0
        %s473 = scalar_select %p472, %s27, 0
        %s474 = sadd.s32 %s473, %s471
        %s475 = smul.addr %s469, 4
        %s476 = sadd.s32 %s474, %s475
        %s477 = smul.addr %s476, 4
        %s478 = scalar_lea.vmem %s4, %s477
        %s479 = sand.u32 %s195, 1
        %s480 = scalar_lea.sflag [#allocation3], %s479
        %s481 = sand.u32 %s195, 1
        %s482 = smul.addr %s481, 8
        %s483 = scalar_lea.vmem [#allocation2], %s482
        // Predicated region
        $region37: #{multi_head_attention.8} parent=35 // pred_check
          %p484 = pneg %p175
        $region38: #{multi_head_attention.8} parent=35 // pred_check_branch
          %486 = sbr.rel (%p484) target = $region40
        $region39: #{multi_head_attention.8} parent=35 // pred_region
          _
        $region40: #{multi_head_attention.8} parent=35 // pred_fallthru
          _
        // Predicated region
        $region41: #{multi_head_attention.8} parent=35 // pred_check
          %p487 = pneg %p205
        $region42: #{multi_head_attention.8} parent=35 // pred_check_branch
          %489 = sbr.rel (%p487) target = $region44
        $region43: #{multi_head_attention.8} parent=35 // pred_region
          %491 = vsyncadd %s480, 0
          %s492 = sadd.s32 %s27, %s26
          %s493 = smul.addr %s25, 4
          %s494 = sadd.s32 %s492, %s493
          %s495 = smul.addr %s494, 8
          %s496 = scalar_lea.hbm %s5, %s495
          %s498 = sshll.u32 %s483, 4
          %s499 = int_to_ptr.vmem [resolvable:$true] %s498
          %s500 = sshll.u32 %s496, 4
          %s501 = int_to_ptr.hbm [resolvable:$true] %s500
          %503 = dma.vmem_to_hbm [thread:$0]  %s499, 128, %s501, %s480
        $region44: #{multi_head_attention.8} parent=35 // pred_fallthru
          _
      $region36: #{multi_head_attention.8} parent=5 // pred_fallthru
        _
      %p504 = scmp.le.s32.totalorder 2, %s15
      // Predicated region
      $region45: #{multi_head_attention.8} parent=5 // pred_check
        %p505 = pneg %p504
      $region46: #{multi_head_attention.8} parent=5 // pred_check_branch
        %507 = sbr.rel (%p505) target = $region48
      $region47: #{multi_head_attention.8} parent=5 // pred_region
        %s508 = ssub.s32 %s15, 2
        // Predicated region
        $region49: #{multi_head_attention.8} parent=47 // pred_check
          %p509 = pneg %p181
        $region50: #{multi_head_attention.8} parent=47 // pred_check_branch
          %511 = sbr.rel (%p509) target = $region52
        $region51: #{multi_head_attention.8} parent=47 // pred_region
          %p512 = scmp.lt.s32.totalorder %s28, 1
          %s513 = scalar_select %p512, %s28, 1
          %p514 = scmp.lt.s32.totalorder %s29, 3
          %s515 = scalar_select %p514, %s29, 3
          %p516 = scmp.lt.s32.totalorder %s30, 0
          %s517 = scalar_select %p516, %s30, 0
          %s518 = sadd.s32 %s517, %s515
          %s519 = smul.addr %s513, 4
          %s520 = sadd.s32 %s518, %s519
          %s521 = smul.addr %s520, 4
          %s522 = scalar_lea.vmem %s4, %s521
        $region52: #{multi_head_attention.8} parent=47 // pred_fallthru
          _
        // Predicated region
        $region53: #{multi_head_attention.8} parent=47 // pred_check
          %p523 = pneg %p211
        $region54: #{multi_head_attention.8} parent=47 // pred_check_branch
          %525 = sbr.rel (%p523) target = $region56
        $region55: #{multi_head_attention.8} parent=47 // pred_region
          %s526 = sand.u32 %s196, 1
          %s527 = scalar_lea.sflag [#allocation3], %s526
          %s528 = sand.u32 %s196, 1
          %s529 = smul.addr %s528, 8
          %s530 = scalar_lea.vmem [#allocation2], %s529
          %532 = dma.done %s527, 128
        $region56: #{multi_head_attention.8} parent=47 // pred_fallthru
          _
      $region48: #{multi_head_attention.8} parent=5 // pred_fallthru
        _
    $region6: #{multi_head_attention.8} parent=1 // loop_footer
      %s19 = sadd.s32 1, %s15
    $region7: #{multi_head_attention.8} parent=1 // loop_footer_branch
      %14 = sbr.rel target = $region3
    $region8: #{multi_head_attention.8} parent=1 // loop_exit
      _
    %533 = vsyncpa [#allocation3], 1
    %s534 = scalar_lea.sflag [#allocation3], 1
    %535 = vsyncpa %s534, 1

// kernel: multi_head_attention.9
$region0: #{multi_head_attention.9}
  #allocation0 [shape = 'u32[]', space=smem, size = 0x4, offset = 0x4, fixed_abs, tag = 'smem constant byte address 0x4 - core index']
  #allocation1 [shape = 'u32[72,128]{1,0:T(1,128)}', space=vmem, size = 0x9000, scoped, tag = 'internal scratch']
  %s0 = inlined_call_operand.vmem [shape: bf16[16,32], index: 0, kind: input, shape index: {}]
  %s1 = inlined_call_operand.vmem [shape: bf16[32,32], index: 1, kind: input, shape index: {}]
  %s2 = inlined_call_operand.vmem [shape: f32[1,32], index: 2, kind: input, shape index: {}]
  %s3 = inlined_call_operand.hbm [shape: f32[16,32], index: 3, kind: output, shape index: {}]
  %s4 = sld [smem:[#allocation0]]
  $region22: #{multi_head_attention.9} parent=0
    _
  %s6 = ssub.s32 1, %s4
  %s7 = scalar_select 0, %s6, %s4
  $region1: #{multi_head_attention.9} parent=0
    #allocation2 [shape = 'u8[8192]{0}', space=vmem, size = 0x2000, scoped, tag = 'output window, operand 0, single buffered']
    #allocation3 [shape = 's32[1]{0}', space=sflag, size = 0x4, scoped, tag = 'scoped memory for multi_head_attention.9']
    %8 = vsyncpa [#allocation3], 0
    // Predicated region
    $region2: #{multi_head_attention.9} parent=1 // pred_check
      _
    $region3: #{multi_head_attention.9} parent=1 // pred_check_branch
      %10 = sbr.rel (0) target = $region5
    $region4: #{multi_head_attention.9} parent=1 // pred_region
      _
    $region5: #{multi_head_attention.9} parent=1 // pred_fallthru
      _
    // Predicated region
    $region6: #{multi_head_attention.9} parent=1 // pred_check
      _
    $region7: #{multi_head_attention.9} parent=1 // pred_check_branch
      %12 = sbr.rel (0) target = $region9
    $region8: #{multi_head_attention.9} parent=1 // pred_region
      _
    $region9: #{multi_head_attention.9} parent=1 // pred_fallthru
      _
    // Predicated region
    $region10: #{multi_head_attention.9} parent=1 // pred_check
      _
    $region11: #{multi_head_attention.9} parent=1 // pred_check_branch
      %14 = sbr.rel (0) target = $region13
    $region12: #{multi_head_attention.9} parent=1 // pred_region
      _
    $region13: #{multi_head_attention.9} parent=1 // pred_fallthru
      _
    %v16 = vld [vmem:[%s0] sm:$0xf]
    %v17 = vld [vmem:[%s0 + $0x4] sm:$0xf]
    %v18 = vld [vmem:[%s1] sm:$0xf]
    %v19 = vld [vmem:[%s1 + $0x4] sm:$0xf]
    %v20 = vld [vmem:[%s1 + $0x8] sm:$0xf]
    %v21 = vld [vmem:[%s1 + $0xc] sm:$0xf]
    %v22 = vld [vmem:[%s2] sm:$0x1]
    %v24 = vperm.slane %v22, 0
    %v28 = vunpack.c.l.b16 %v16
    %v29 = vunpack.c.l.b16 %v17
    %v30 = vpack.c.b16 %v29, %v28
    %v35 = vunpack.c.l.b16 %v18
    %v36 = vunpack.c.l.b16 %v19
    %v37 = vunpack.c.l.b16 %v20
    %v38 = vunpack.c.l.b16 %v21
    %v39 = vpack.c.b16 %v36, %v35
    %v40 = vpack.c.b16 %v38, %v37
    %vm43 = vcmask 261120
    %v45 = vsel %vm43, %v30, 0
    %47 = vmatpush.bf16.msra.mxu0 0
    %48 = vmatpush.bf16.msra.mxu0 0
    %49 = vmatpush.bf16.msra.mxu0 0
    %50 = vmatpush.bf16.msra.mxu0 0
    %51 = vmatpush.bf16.msra.mxu0 0
    %52 = vmatpush.bf16.msra.mxu0 0
    %53 = vmatpush.bf16.msra.mxu0 %v40
    %54 = vmatpush.bf16.msra.mxu0 %v39
    %55 = vmatmul.bf16.gmra.mxu0 %v45
    %v56 = vpop.f32.mrf.mxu0
    %v57 = vadd.f32 %v24, %v56
    %v58 = vpop.f32.mrf.mxu0
    %v59 = vadd.f32 %v24, %v58
    %60 = vdwg.mxu0
    %61 = vst.msk [vmem:[#allocation2] sm:$0xff] %vm43, %v57
    %62 = vst.msk [vmem:[#allocation2 + $0x8] sm:$0xff] %vm43, %v59
    // Predicated region
    $region14: #{multi_head_attention.9} parent=1 // pred_check
      _
    $region15: #{multi_head_attention.9} parent=1 // pred_check_branch
      %64 = sbr.rel (0) target = $region17
    $region16: #{multi_head_attention.9} parent=1 // pred_region
      %66 = vsyncadd [#allocation3], 0
      %s67 = sshll.u32 [#allocation2], 4
      %s68 = int_to_ptr.vmem [resolvable:$true] %s67
      %s69 = sshll.u32 %s3, 4
      %s70 = int_to_ptr.hbm [resolvable:$true] %s69
      %75 = dma.vmem_to_hbm [thread:$0]  %s68, 256, %s70, [#allocation3], 128, 128, 8
    $region17: #{multi_head_attention.9} parent=1 // pred_fallthru
      _
    // Predicated region
    $region18: #{multi_head_attention.9} parent=1 // pred_check
      _
    $region19: #{multi_head_attention.9} parent=1 // pred_check_branch
      %77 = sbr.rel (0) target = $region21
    $region20: #{multi_head_attention.9} parent=1 // pred_region
      %79 = dma.done [#allocation3], 256
    $region21: #{multi_head_attention.9} parent=1 // pred_fallthru
      _
    %80 = vsyncpa [#allocation3], 1

// kernel: multi_head_attention.6
$region0: #{multi_head_attention.6}
  #allocation0 [shape = 'u32[]', space=smem, size = 0x4, offset = 0x4, fixed_abs, tag = 'smem constant byte address 0x4 - core index']
  #allocation1 [shape = 'u32[72,128]{1,0:T(1,128)}', space=vmem, size = 0x9000, scoped, tag = 'internal scratch']
  %s0 = inlined_call_operand.vmem [shape: bf16[16,32], index: 0, kind: input, shape index: {}]
  %s1 = inlined_call_operand.hbm [shape: bf16[32,32], index: 1, kind: input, shape index: {}]
  %s2 = inlined_call_operand.vmem [shape: f32[1,32], index: 2, kind: input, shape index: {}]
  %s3 = inlined_call_operand.vmem [shape: bf16[16,32], index: 3, kind: output, shape index: {}]
  %s4 = sld [smem:[#allocation0]]
  $region26: #{multi_head_attention.6} parent=0
    _
  %s6 = ssub.s32 1, %s4
  %s7 = scalar_select 0, %s6, %s4
  $region1: #{multi_head_attention.6} parent=0
    #allocation2 [shape = 'u8[8192]{0}', space=vmem, size = 0x2000, scoped, tag = 'input window, operand 1, single buffered']
    #allocation3 [shape = 's32[1]{0}', space=sflag, size = 0x4, scoped, tag = 'scoped memory for multi_head_attention.6']
    %8 = vsyncpa [#allocation3], 0
    // Predicated region
    $region2: #{multi_head_attention.6} parent=1 // pred_check
      _
    $region3: #{multi_head_attention.6} parent=1 // pred_check_branch
      %10 = sbr.rel (0) target = $region5
    $region4: #{multi_head_attention.6} parent=1 // pred_region
      _
    $region5: #{multi_head_attention.6} parent=1 // pred_fallthru
      _
    // Predicated region
    $region6: #{multi_head_attention.6} parent=1 // pred_check
      _
    $region7: #{multi_head_attention.6} parent=1 // pred_check_branch
      %12 = sbr.rel (0) target = $region9
    $region8: #{multi_head_attention.6} parent=1 // pred_region
      %14 = vsyncadd [#allocation3], 0
      %s15 = sshll.u32 %s1, 4
      %s16 = int_to_ptr.hbm [resolvable:$true] %s15
      %s17 = sshll.u32 [#allocation2], 4
      %s18 = int_to_ptr.vmem [resolvable:$true] %s17
      %23 = dma.hbm_to_vmem [thread:$0]  %s16, 256, %s18, [#allocation3], 64, 64, 4
    $region9: #{multi_head_attention.6} parent=1 // pred_fallthru
      _
    // Predicated region
    $region10: #{multi_head_attention.6} parent=1 // pred_check
      _
    $region11: #{multi_head_attention.6} parent=1 // pred_check_branch
      %25 = sbr.rel (0) target = $region13
    $region12: #{multi_head_attention.6} parent=1 // pred_region
      _
    $region13: #{multi_head_attention.6} parent=1 // pred_fallthru
      _
    // Predicated region
    $region14: #{multi_head_attention.6} parent=1 // pred_check
      _
    $region15: #{multi_head_attention.6} parent=1 // pred_check_branch
      %27 = sbr.rel (0) target = $region17
    $region16: #{multi_head_attention.6} parent=1 // pred_region
      %29 = dma.done [#allocation3], 256
    $region17: #{multi_head_attention.6} parent=1 // pred_fallthru
      _
    %v31 = vld [vmem:[%s0] sm:$0xf]
    %v32 = vld [vmem:[%s0 + $0x4] sm:$0xf]
    %v33 = vld [vmem:[#allocation2] sm:$0xf]
    %v34 = vld [vmem:[#allocation2 + $0x4] sm:$0xf]
    %v35 = vld [vmem:[#allocation2 + $0x8] sm:$0xf]
    %v36 = vld [vmem:[#allocation2 + $0xc] sm:$0xf]
    %v37 = vld [vmem:[%s2] sm:$0x1]
    %v39 = vperm.slane %v37, 0
    %v43 = vunpack.c.l.b16 %v31
    %v44 = vunpack.c.l.b16 %v32
    %v45 = vpack.c.b16 %v44, %v43
    %v50 = vunpack.c.l.b16 %v33
    %v51 = vunpack.c.l.b16 %v34
    %v52 = vunpack.c.l.b16 %v35
    %v53 = vunpack.c.l.b16 %v36
    %v54 = vpack.c.b16 %v51, %v50
    %v55 = vpack.c.b16 %v53, %v52
    %vm58 = vcmask 261120
    %v60 = vsel %vm58, %v45, 0
    %62 = vmatpush.bf16.msra.mxu0 0
    %63 = vmatpush.bf16.msra.mxu0 0
    %64 = vmatpush.bf16.msra.mxu0 0
    %65 = vmatpush.bf16.msra.mxu0 0
    %66 = vmatpush.bf16.msra.mxu0 0
    %67 = vmatpush.bf16.msra.mxu0 0
    %68 = vmatpush.bf16.msra.mxu0 %v55
    %69 = vmatpush.bf16.msra.mxu0 %v54
    %70 = vmatmul.bf16.gmra.mxu0 %v60
    %v71 = vpop.f32.mrf.mxu0
    %v72 = vadd.f32 %v39, %v71
    %v73 = vpop.f32.mrf.mxu0
    %v74 = vadd.f32 %v39, %v73
    %75 = vdwg.mxu0
    %v76 = vpack.c.bf16 %v72, %v72
    %v77 = vpack.c.bf16 %v74, %v74
    %vm78 = vcmask 257024
    %79 = vst.msk [vmem:[%s3] sm:$0xf] %vm78, %v76
    %80 = vst.msk [vmem:[%s3 + $0x4] sm:$0xf] %vm78, %v77
    // Predicated region
    $region18: #{multi_head_attention.6} parent=1 // pred_check
      _
    $region19: #{multi_head_attention.6} parent=1 // pred_check_branch
      %82 = sbr.rel (0) target = $region21
    $region20: #{multi_head_attention.6} parent=1 // pred_region
      _
    $region21: #{multi_head_attention.6} parent=1 // pred_fallthru
      _
    // Predicated region
    $region22: #{multi_head_attention.6} parent=1 // pred_check
      _
    $region23: #{multi_head_attention.6} parent=1 // pred_check_branch
      %84 = sbr.rel (0) target = $region25
    $region24: #{multi_head_attention.6} parent=1 // pred_region
      _
    $region25: #{multi_head_attention.6} parent=1 // pred_fallthru
      _
    %85 = vsyncpa [#allocation3], 1

</llo_original>
